<compile_context>
chip_gen: v5e
topology: v5e:2x2
jax: 0.10.0
libtpu: 0.0.40
codegen_flags: <defaults>
</compile_context>

<pallas_src>
import functools

import jax
import jax.numpy as jnp
from jax.experimental import pallas as pl
from jax.experimental.pallas import tpu as pltpu

HIDDEN = 128
# Per-tile compute is only ~1-2 us (EUP/tanh bound), so a big batch tile is
# needed to amortize the ~0.35 us per-grid-step overhead.  4096 keeps the
# f32/bf16 intermediates well under the 32 MiB scoped VMEM limit on every
# generation (including v7x's 64 MiB physical VMEM).
DEFAULT_TILE_N = 4096


def _round_up(x, m):
    return (x + m - 1) // m * m


def _has_bf16_eup():
    """True on chips with a bf16 VPU/EUP path (v6e, v7x); v5e and older -> False."""
    try:
        kind = jax.devices()[0].device_kind.lower()
    except Exception:
        return False
    return ("v6" in kind) or ("v7" in kind) or ("7x" in kind)


def _mlp_kernel(t_ref, w1_ref, b1_ref, w2_ref, b2_ref, w3_ref, b3_ref, o_ref,
                *, act_dtype):
    """One batch tile.  Layout: features on sublanes, batch samples on lanes.

    t_ref : (1, TILE_N) f32      w1_ref, b1_ref, b2_ref, w3_ref : (H, 1) f32
    w2_ref: (H, H)      bf16     b3_ref : (1, 1) f32
    o_ref : (1, TILE_N) f32
    """
    t = t_ref[...]                                              # (1, TN) f32
    # Layer 1 (K=1): outer-product broadcast on the VPU, tanh on the EUP.
    z1 = w1_ref[...] * t + b1_ref[...]                          # (H, TN) f32
    # act_dtype = bf16 on v6e/v7x (packed-bf16 tanh, single bf16 h1 buffer),
    # f32 on v5e (no bf16 EUP); the MXU consumes bf16 either way.
    h1 = jnp.tanh(z1.astype(act_dtype)).astype(jnp.bfloat16)    # (H, TN) bf16
    # Layer 2: real MXU matmul, bf16 operands, f32 accumulation.
    z2 = jnp.dot(w2_ref[...], h1, preferred_element_type=jnp.float32)
    h2 = jnp.tanh(z2 + b2_ref[...])                             # (H, TN) f32
    # Layer 3 (H -> 1): degenerate matmul kept off the MXU as a VPU multiply
    # + XLU sublane reduce; lane-dense (1, TN) store.
    # TODO(synk): profile-gated alternative: (1,H)x(H,TN) bf16 MXU matmul if
    # the bundle ever shows VALU/vst saturation (mainly v5e).
    o_ref[...] = jnp.sum(w3_ref[...] * h2, axis=0, keepdims=True) + b3_ref[...]


def _choose_tile(n, tile_n):
    """Lane-dense tile (multiple of 128), capped at the padded batch, and split
    so the 'parallel' batch axis has >= 2 grid steps when there is enough work
    (lets v7x's two TensorCores both participate)."""
    n128 = _round_up(max(int(n), 1), 128)
    tile = min(_round_up(max(int(tile_n), 128), 128), n128)
    if n128 >= 256 and n128 <= tile:
        tile = _round_up(pl.cdiv(n128, 2), 128)
    return tile


def pendulum_forward(t, params, *, tile_n=DEFAULT_TILE_N, act_dtype=None):
    """3-layer MLP forward pass, batch-tiled over a 1-D Pallas grid."""
    w1, b1, w2, b2, w3, b3 = params          # math layout: W (in, out), b (1, out)
    assert t.ndim == 2 and t.shape[1] == 1, "t must be (N, 1)"
    n = t.shape[0]
    h = w2.shape[0]
    if act_dtype is None:
        act_dtype = jnp.bfloat16 if _has_bf16_eup() else jnp.float32

    tile = _choose_tile(n, tile_n)
    num_tiles = pl.cdiv(n, tile)

    # Batch on the lane axis; no host-side padding copy.  Pallas handles the
    # ragged last block: OOB reads are garbage that never crosses lanes, OOB
    # stores are dropped, and the wrapper returns exactly N rows.
    t_row = t.reshape(1, n).astype(jnp.float32)

    # Kernel-layout weights: feature-major columns; W2 transposed + bf16 (MXU).
    w1c = w1.reshape(h, 1).astype(jnp.float32)
    b1c = b1.reshape(h, 1).astype(jnp.float32)
    w2k = w2.T.astype(jnp.bfloat16)          # (out, in) so h2 = W2k @ h1
    b2c = b2.reshape(h, 1).astype(jnp.float32)
    w3c = w3.reshape(h, 1).astype(jnp.float32)
    b3c = b3.reshape(1, 1).astype(jnp.float32)

    batch_spec = pl.BlockSpec((1, tile), lambda i: (0, i))

    def const_spec(shape):
        return pl.BlockSpec(shape, lambda i: (0, 0))

    cost = pl.CostEstimate(
        flops=int(n) * (2 * h * h + 8 * h + 2),
        transcendentals=int(n) * 2 * h,
        bytes_accessed=8 * int(n) + 2 * h * h + 16 * h + 4,
    )

    out_row = pl.pallas_call(
        functools.partial(_mlp_kernel, act_dtype=act_dtype),
        out_shape=jax.ShapeDtypeStruct((1, n), jnp.float32),
        grid=(num_tiles,),
        in_specs=[
            batch_spec,            # t
            const_spec((h, 1)),    # w1
            const_spec((h, 1)),    # b1
            const_spec((h, h)),    # w2 (bf16)
            const_spec((h, 1)),    # b2
            const_spec((h, 1)),    # w3
            const_spec((1, 1)),    # b3
        ],
        out_specs=batch_spec,
        compiler_params=pltpu.CompilerParams(
            dimension_semantics=(pltpu.PARALLEL,),
            vmem_limit_bytes=32 * 1024 * 1024,
        ),
        cost_estimate=cost,
    )(t_row, w1c, b1c, w2k, b2c, w3c, b3c)

    return out_row.reshape(n, 1)


def init_params(key, hidden=HIDDEN):
    """Deterministic init mimicking torch.nn.Linear defaults (U(-1/sqrt(fan_in), +))."""
    k1, k2, k3, k4, k5, k6 = jax.random.split(key, 6)

    def lin(kw, kb, fan_in, fan_out):
        bound = 1.0 / jnp.sqrt(fan_in)
        w = jax.random.uniform(kw, (fan_in, fan_out), jnp.float32, -bound, bound)
        b = jax.random.uniform(kb, (1, fan_out), jnp.float32, -bound, bound)
        return w, b

    w1, b1 = lin(k1, k2, 1, hidden)
    w2, b2 = lin(k3, k4, hidden, hidden)
    w3, b3 = lin(k5, k6, hidden, 1)
    return (w1, b1, w2, b2, w3, b3)


def _reference_forward_f32(t, params):
    """Full-precision reference (forces true f32 matmuls)."""
    w1, b1, w2, b2, w3, b3 = params
    h1 = jnp.tanh(t * w1 + b1)
    h2 = jnp.tanh(jnp.dot(h1, w2, precision=jax.lax.Precision.HIGHEST) + b2)
    return jnp.dot(h2, w3, precision=jax.lax.Precision.HIGHEST) + b3


def _reference_forward_matched(t, params, act_dtype):
    """Numerics-matched reference: same activation dtype for layer-1 tanh, bf16
    MXU operands with f32 accumulation for layer 2, f32 elementwise layer 3."""
    w1, b1, w2, b2, w3, b3 = params
    z1 = t * w1 + b1                                            # (N, H) f32
    h1 = jnp.tanh(z1.astype(act_dtype)).astype(jnp.bfloat16)
    z2 = jnp.dot(h1, w2.astype(jnp.bfloat16), preferred_element_type=jnp.float32)
    h2 = jnp.tanh(z2 + b2)
    return jnp.sum(h2 * w3[:, 0][None, :], axis=-1, keepdims=True) + b3


if __name__ == "__main__":
    key = jax.random.PRNGKey(0)
    kp, kt = jax.random.split(key)

    params = init_params(kp)

    # Physics parameters (not used by forward(); clamped like the module init).
    g = jnp.clip(jnp.float32(9.8), 8.0, 11.0)
    L = jnp.clip(jnp.float32(1.0), 0.3, 3.0)
    damping = jnp.clip(jnp.float32(0.05), 0.01, 0.1)
    del g, L, damping

    act_dtype = jnp.bfloat16 if _has_bf16_eup() else jnp.float32

    # Small (N, 1) batch like the PyTorch module expects: single (ragged) tile.
    t_small = jax.random.uniform(kt, (8, 1), jnp.float32, 0.0, 10.0)
    out_small = jax.block_until_ready(pendulum_forward(t_small, params))
    assert out_small.shape == (8, 1) and out_small.dtype == jnp.float32
    assert jnp.allclose(out_small,
                        _reference_forward_matched(t_small, params, act_dtype),
                        atol=3e-2, rtol=3e-2)
    # Loose check vs the true-f32 reference (bf16 layer-1/2 introduce small err).
    assert jnp.allclose(out_small, _reference_forward_f32(t_small, params),
                        atol=1e-1, rtol=1e-1)

    # Multi-tile grid + ragged last block (300 samples, TILE_N=128 -> 3 steps).
    t_big = jax.random.uniform(jax.random.PRNGKey(1), (300, 1), jnp.float32, 0.0, 10.0)
    out_big = jax.block_until_ready(pendulum_forward(t_big, params, tile_n=128))
    assert out_big.shape == (300, 1)
    assert jnp.allclose(out_big,
                        _reference_forward_matched(t_big, params, act_dtype),
                        atol=3e-2, rtol=3e-2)

    # Default tile: exercises the ">= 2 grid steps" split (600 -> two tiles).
    t_mid = jax.random.uniform(jax.random.PRNGKey(2), (600, 1), jnp.float32, 0.0, 10.0)
    out_mid = jax.block_until_ready(pendulum_forward(t_mid, params))
    assert out_mid.shape == (600, 1)
    assert jnp.allclose(out_mid,
                        _reference_forward_matched(t_mid, params, act_dtype),
                        atol=3e-2, rtol=3e-2)

    print("KERNEL_OK")
</pallas_src>

<mosaic_0001>
module attributes {stable_mosaic.version = 11 : i64} {
  func.func @_mlp_kernel(%arg0: i32, %arg1: memref<1x128xf32, #tpu.memory_space<vmem>>, %arg2: memref<128x1xf32, #tpu.memory_space<vmem>>, %arg3: memref<128x1xf32, #tpu.memory_space<vmem>>, %arg4: memref<128x128xbf16, #tpu.memory_space<vmem>>, %arg5: memref<128x1xf32, #tpu.memory_space<vmem>>, %arg6: memref<128x1xf32, #tpu.memory_space<vmem>>, %arg7: memref<1x1xf32, #tpu.memory_space<vmem>>, %arg8: memref<1x128xf32, #tpu.memory_space<vmem>>) attributes {dimension_semantics = [#tpu.dimension_semantics<parallel>], iteration_bounds = array<i64: 1>, scalar_prefetch = 0 : i64, scratch_operands = 0 : i64, tpu.core_type = #tpu.core_type<tc>, window_params = [{transform_indices = @transform_0, window_bounds = array<i64: 1, 128>}, {pipeline_mode = #tpu.pipeline_mode<synchronous>, transform_indices = @transform_1, window_bounds = array<i64: 128, 1>}, {pipeline_mode = #tpu.pipeline_mode<synchronous>, transform_indices = @transform_2, window_bounds = array<i64: 128, 1>}, {pipeline_mode = #tpu.pipeline_mode<synchronous>, transform_indices = @transform_3, window_bounds = array<i64: 128, 128>}, {pipeline_mode = #tpu.pipeline_mode<synchronous>, transform_indices = @transform_4, window_bounds = array<i64: 128, 1>}, {pipeline_mode = #tpu.pipeline_mode<synchronous>, transform_indices = @transform_5, window_bounds = array<i64: 128, 1>}, {pipeline_mode = #tpu.pipeline_mode<synchronous>, transform_indices = @transform_6, window_bounds = array<i64: 1, 1>}, {transform_indices = @transform_7, window_bounds = array<i64: 1, 128>}]} {
    %c0 = arith.constant 0 : index
    %c0_0 = arith.constant 0 : index
    %0 = vector.load %arg1[%c0, %c0_0] : memref<1x128xf32, #tpu.memory_space<vmem>>, vector<1x128xf32>
    %c0_1 = arith.constant 0 : index
    %c0_2 = arith.constant 0 : index
    %1 = vector.load %arg2[%c0_1, %c0_2] : memref<128x1xf32, #tpu.memory_space<vmem>>, vector<128x1xf32>
    %2 = vector.broadcast %1 : vector<128x1xf32> to vector<128x128xf32>
    %3 = vector.broadcast %0 : vector<1x128xf32> to vector<128x128xf32>
    %4 = arith.mulf %2, %3 : vector<128x128xf32>
    %c0_3 = arith.constant 0 : index
    %c0_4 = arith.constant 0 : index
    %5 = vector.load %arg3[%c0_3, %c0_4] : memref<128x1xf32, #tpu.memory_space<vmem>>, vector<128x1xf32>
    %6 = vector.broadcast %5 : vector<128x1xf32> to vector<128x128xf32>
    %7 = arith.addf %4, %6 : vector<128x128xf32>
    %8 = math.tanh %7 : vector<128x128xf32>
    %9 = arith.truncf %8 : vector<128x128xf32> to vector<128x128xbf16>
    %c0_5 = arith.constant 0 : index
    %c0_6 = arith.constant 0 : index
    %10 = vector.load %arg4[%c0_5, %c0_6] : memref<128x128xbf16, #tpu.memory_space<vmem>>, vector<128x128xbf16>
    %cst = arith.constant dense<0.000000e+00> : vector<128x128xf32>
    %11 = tpu.matmul %10, %9, %cst {dimension_numbers = #tpu.dot_dimension_numbers<[1], [0], [0], [1], [0, 0, 1, 1], [], []>} : vector<128x128xbf16>, vector<128x128xbf16>, vector<128x128xf32> -> vector<128x128xf32>
    %c0_7 = arith.constant 0 : index
    %c0_8 = arith.constant 0 : index
    %12 = vector.load %arg5[%c0_7, %c0_8] : memref<128x1xf32, #tpu.memory_space<vmem>>, vector<128x1xf32>
    %13 = vector.broadcast %12 : vector<128x1xf32> to vector<128x128xf32>
    %14 = arith.addf %11, %13 : vector<128x128xf32>
    %15 = math.tanh %14 : vector<128x128xf32>
    %c0_9 = arith.constant 0 : index
    %c0_10 = arith.constant 0 : index
    %16 = vector.load %arg6[%c0_9, %c0_10] : memref<128x1xf32, #tpu.memory_space<vmem>>, vector<128x1xf32>
    %17 = vector.broadcast %16 : vector<128x1xf32> to vector<128x128xf32>
    %18 = arith.mulf %17, %15 : vector<128x128xf32>
    %cst_11 = arith.constant dense<0.000000e+00> : vector<128xf32>
    %19 = vector.multi_reduction <add>, %18, %cst_11 [0] : vector<128x128xf32> to vector<128xf32>
    %20 = vector.shape_cast %19 : vector<128xf32> to vector<1x128xf32>
    %c0_12 = arith.constant 0 : index
    %c0_13 = arith.constant 0 : index
    %21 = vector.load %arg7[%c0_12, %c0_13] : memref<1x1xf32, #tpu.memory_space<vmem>>, vector<1x1xf32>
    %22 = vector.broadcast %21 : vector<1x1xf32> to vector<1x128xf32>
    %23 = arith.addf %20, %22 : vector<1x128xf32>
    %c0_14 = arith.constant 0 : index
    %c0_15 = arith.constant 0 : index
    %24 = vector.load %arg8[%c0_14, %c0_15] : memref<1x128xf32, #tpu.memory_space<vmem>>, vector<1x128xf32>
    tpu.vector_store %arg8[%c0_14, %c0_15], %23 {strides = array<i32>} : memref<1x128xf32, #tpu.memory_space<vmem>>, vector<1x128xf32>,
    return
  }
  func.func @transform_0(%arg0: i32) -> (i32, i32) {
    %c0_i32 = arith.constant 0 : i32
    %c0_i32_0 = arith.constant 0 : i32
    return %c0_i32, %arg0 : i32, i32
  }
  func.func @transform_1(%arg0: i32) -> (i32, i32) {
    %c0_i32 = arith.constant 0 : i32
    %c0_i32_0 = arith.constant 0 : i32
    %c0_i32_1 = arith.constant 0 : i32
    return %c0_i32, %c0_i32_0 : i32, i32
  }
  func.func @transform_2(%arg0: i32) -> (i32, i32) {
    %c0_i32 = arith.constant 0 : i32
    %c0_i32_0 = arith.constant 0 : i32
    %c0_i32_1 = arith.constant 0 : i32
    return %c0_i32, %c0_i32_0 : i32, i32
  }
  func.func @transform_3(%arg0: i32) -> (i32, i32) {
    %c0_i32 = arith.constant 0 : i32
    %c0_i32_0 = arith.constant 0 : i32
    %c0_i32_1 = arith.constant 0 : i32
    return %c0_i32, %c0_i32_0 : i32, i32
  }
  func.func @transform_4(%arg0: i32) -> (i32, i32) {
    %c0_i32 = arith.constant 0 : i32
    %c0_i32_0 = arith.constant 0 : i32
    %c0_i32_1 = arith.constant 0 : i32
    return %c0_i32, %c0_i32_0 : i32, i32
  }
  func.func @transform_5(%arg0: i32) -> (i32, i32) {
    %c0_i32 = arith.constant 0 : i32
    %c0_i32_0 = arith.constant 0 : i32
    %c0_i32_1 = arith.constant 0 : i32
    return %c0_i32, %c0_i32_0 : i32, i32
  }
  func.func @transform_6(%arg0: i32) -> (i32, i32) {
    %c0_i32 = arith.constant 0 : i32
    %c0_i32_0 = arith.constant 0 : i32
    %c0_i32_1 = arith.constant 0 : i32
    return %c0_i32, %c0_i32_0 : i32, i32
  }
  func.func @transform_7(%arg0: i32) -> (i32, i32) {
    %c0_i32 = arith.constant 0 : i32
    %c0_i32_0 = arith.constant 0 : i32
    return %c0_i32, %arg0 : i32, i32
  }
}

</mosaic_0001>

<llo_original>
// kernel: tpu_custom_call.1
$region0: #{tpu_custom_call.1}
  #allocation0 [shape = 'u32[]', space=smem, size = 0x4, offset = 0x4, fixed_abs, tag = 'smem constant byte address 0x4 - core index']
  #allocation1 [shape = 'u32[72,128]{1,0:T(1,128)}', space=vmem, size = 0x9000, scoped, tag = 'internal scratch']
  #allocation2 [shape = 'f32[1,1]{1,0:T(1,128)S(1)}', space=vmem, size = 0x200, scoped, tag = 'scoped memory for tpu_custom_call.1']
  %s0 = inlined_call_operand.vmem [shape: f32[1,8], index: 0, kind: input, shape index: {}]
  %s1 = inlined_call_operand.vmem [shape: f32[128,1], index: 1, kind: input, shape index: {}]
  %s2 = inlined_call_operand.vmem [shape: f32[128,1], index: 2, kind: input, shape index: {}]
  %s3 = inlined_call_operand.vmem [shape: bf16[128,128], index: 3, kind: input, shape index: {}]
  %s4 = inlined_call_operand.vmem [shape: f32[128,1], index: 4, kind: input, shape index: {}]
  %s5 = inlined_call_operand.vmem [shape: f32[128,1], index: 5, kind: input, shape index: {}]
  %s6 = inlined_call_operand.<no memory space> [shape: f32[1,1], index: 6, kind: input, shape index: {}]
  %s7 = inlined_call_operand.hbm [shape: f32[1,8], index: 7, kind: output, shape index: {}]
  %s8 = sld [smem:[#allocation0]]
  $region38: #{tpu_custom_call.1} parent=0
    _
  %s10 = ssub.s32 1, %s8
  %s11 = scalar_select 0, %s10, %s8
  %v12 = vstv %s6
  %13 = vst [vmem:[#allocation2] sm:$0x1] %v12
  $region1: #{tpu_custom_call.1} parent=0
    #allocation3 [shape = 'u8[512]{0}', space=vmem, size = 0x400, scoped, tag = 'output window, operand 0, single buffered']
    #allocation4 [shape = 's32[1]{0}', space=sflag, size = 0x4, scoped, tag = 'scoped memory for tpu_custom_call.1']
    %14 = vsyncpa [#allocation4], 0
    // Predicated region
    $region2: #{tpu_custom_call.1} parent=1 // pred_check
      _
    $region3: #{tpu_custom_call.1} parent=1 // pred_check_branch
      %16 = sbr.rel (0) target = $region5
    $region4: #{tpu_custom_call.1} parent=1 // pred_region
      _
    $region5: #{tpu_custom_call.1} parent=1 // pred_fallthru
      _
    // Predicated region
    $region6: #{tpu_custom_call.1} parent=1 // pred_check
      _
    $region7: #{tpu_custom_call.1} parent=1 // pred_check_branch
      %18 = sbr.rel (0) target = $region9
    $region8: #{tpu_custom_call.1} parent=1 // pred_region
      _
    $region9: #{tpu_custom_call.1} parent=1 // pred_fallthru
      _
    // Predicated region
    $region10: #{tpu_custom_call.1} parent=1 // pred_check
      _
    $region11: #{tpu_custom_call.1} parent=1 // pred_check_branch
      %20 = sbr.rel (0) target = $region13
    $region12: #{tpu_custom_call.1} parent=1 // pred_region
      _
    $region13: #{tpu_custom_call.1} parent=1 // pred_fallthru
      _
    // Predicated region
    $region14: #{tpu_custom_call.1} parent=1 // pred_check
      _
    $region15: #{tpu_custom_call.1} parent=1 // pred_check_branch
      %22 = sbr.rel (0) target = $region17
    $region16: #{tpu_custom_call.1} parent=1 // pred_region
      _
    $region17: #{tpu_custom_call.1} parent=1 // pred_fallthru
      _
    // Predicated region
    $region18: #{tpu_custom_call.1} parent=1 // pred_check
      _
    $region19: #{tpu_custom_call.1} parent=1 // pred_check_branch
      %24 = sbr.rel (0) target = $region21
    $region20: #{tpu_custom_call.1} parent=1 // pred_region
      _
    $region21: #{tpu_custom_call.1} parent=1 // pred_fallthru
      _
    // Predicated region
    $region22: #{tpu_custom_call.1} parent=1 // pred_check
      _
    $region23: #{tpu_custom_call.1} parent=1 // pred_check_branch
      %26 = sbr.rel (0) target = $region25
    $region24: #{tpu_custom_call.1} parent=1 // pred_region
      _
    $region25: #{tpu_custom_call.1} parent=1 // pred_fallthru
      _
    // Predicated region
    $region26: #{tpu_custom_call.1} parent=1 // pred_check
      _
    $region27: #{tpu_custom_call.1} parent=1 // pred_check_branch
      %28 = sbr.rel (0) target = $region29
    $region28: #{tpu_custom_call.1} parent=1 // pred_region
      _
    $region29: #{tpu_custom_call.1} parent=1 // pred_fallthru
      _
    %v29 = vld [vmem:[%s0] sm:$0x1]
    %v30 = vld [vmem:[%s1] sm:$0xff]
    %v31 = vld [vmem:[%s1 + $0x8] sm:$0xff]
    %v32 = vld [vmem:[%s1 + $0x10] sm:$0xff]
    %v33 = vld [vmem:[%s1 + $0x18] sm:$0xff]
    %v34 = vld [vmem:[%s1 + $0x20] sm:$0xff]
    %v35 = vld [vmem:[%s1 + $0x28] sm:$0xff]
    %v36 = vld [vmem:[%s1 + $0x30] sm:$0xff]
    %v37 = vld [vmem:[%s1 + $0x38] sm:$0xff]
    %v38 = vld [vmem:[%s1 + $0x40] sm:$0xff]
    %v39 = vld [vmem:[%s1 + $0x48] sm:$0xff]
    %v40 = vld [vmem:[%s1 + $0x50] sm:$0xff]
    %v41 = vld [vmem:[%s1 + $0x58] sm:$0xff]
    %v42 = vld [vmem:[%s1 + $0x60] sm:$0xff]
    %v43 = vld [vmem:[%s1 + $0x68] sm:$0xff]
    %v44 = vld [vmem:[%s1 + $0x70] sm:$0xff]
    %v45 = vld [vmem:[%s1 + $0x78] sm:$0xff]
    %47 = vset.pattern.permute.xlu0 0
    %48 = vperm.xlu0 %47, %v30
    %v49 = vpop.permute.xlu0 %48
    %52 = vset.pattern.permute.xlu0 0
    %53 = vperm.xlu0 %52, %v31
    %v54 = vpop.permute.xlu0 %53
    %57 = vset.pattern.permute.xlu0 0
    %58 = vperm.xlu0 %57, %v32
    %v59 = vpop.permute.xlu0 %58
    %62 = vset.pattern.permute.xlu0 0
    %63 = vperm.xlu0 %62, %v33
    %v64 = vpop.permute.xlu0 %63
    %67 = vset.pattern.permute.xlu0 0
    %68 = vperm.xlu0 %67, %v34
    %v69 = vpop.permute.xlu0 %68
    %72 = vset.pattern.permute.xlu0 0
    %73 = vperm.xlu0 %72, %v35
    %v74 = vpop.permute.xlu0 %73
    %77 = vset.pattern.permute.xlu0 0
    %78 = vperm.xlu0 %77, %v36
    %v79 = vpop.permute.xlu0 %78
    %82 = vset.pattern.permute.xlu0 0
    %83 = vperm.xlu0 %82, %v37
    %v84 = vpop.permute.xlu0 %83
    %87 = vset.pattern.permute.xlu0 0
    %88 = vperm.xlu0 %87, %v38
    %v89 = vpop.permute.xlu0 %88
    %92 = vset.pattern.permute.xlu0 0
    %93 = vperm.xlu0 %92, %v39
    %v94 = vpop.permute.xlu0 %93
    %97 = vset.pattern.permute.xlu0 0
    %98 = vperm.xlu0 %97, %v40
    %v99 = vpop.permute.xlu0 %98
    %102 = vset.pattern.permute.xlu0 0
    %103 = vperm.xlu0 %102, %v41
    %v104 = vpop.permute.xlu0 %103
    %107 = vset.pattern.permute.xlu0 0
    %108 = vperm.xlu0 %107, %v42
    %v109 = vpop.permute.xlu0 %108
    %112 = vset.pattern.permute.xlu0 0
    %113 = vperm.xlu0 %112, %v43
    %v114 = vpop.permute.xlu0 %113
    %117 = vset.pattern.permute.xlu0 0
    %118 = vperm.xlu0 %117, %v44
    %v119 = vpop.permute.xlu0 %118
    %122 = vset.pattern.permute.xlu0 0
    %123 = vperm.xlu0 %122, %v45
    %v124 = vpop.permute.xlu0 %123
    %v127 = vperm.slane %v29, 0
    %v129 = vmul.f32 %v49, %v127
    %v130 = vmul.f32 %v54, %v127
    %v131 = vmul.f32 %v59, %v127
    %v132 = vmul.f32 %v64, %v127
    %v133 = vmul.f32 %v69, %v127
    %v134 = vmul.f32 %v74, %v127
    %v135 = vmul.f32 %v79, %v127
    %v136 = vmul.f32 %v84, %v127
    %v137 = vmul.f32 %v89, %v127
    %v138 = vmul.f32 %v94, %v127
    %v139 = vmul.f32 %v99, %v127
    %v140 = vmul.f32 %v104, %v127
    %v141 = vmul.f32 %v109, %v127
    %v142 = vmul.f32 %v114, %v127
    %v143 = vmul.f32 %v119, %v127
    %v144 = vmul.f32 %v124, %v127
    %v145 = vld [vmem:[%s2] sm:$0xff]
    %v146 = vld [vmem:[%s2 + $0x8] sm:$0xff]
    %v147 = vld [vmem:[%s2 + $0x10] sm:$0xff]
    %v148 = vld [vmem:[%s2 + $0x18] sm:$0xff]
    %v149 = vld [vmem:[%s2 + $0x20] sm:$0xff]
    %v150 = vld [vmem:[%s2 + $0x28] sm:$0xff]
    %v151 = vld [vmem:[%s2 + $0x30] sm:$0xff]
    %v152 = vld [vmem:[%s2 + $0x38] sm:$0xff]
    %v153 = vld [vmem:[%s2 + $0x40] sm:$0xff]
    %v154 = vld [vmem:[%s2 + $0x48] sm:$0xff]
    %v155 = vld [vmem:[%s2 + $0x50] sm:$0xff]
    %v156 = vld [vmem:[%s2 + $0x58] sm:$0xff]
    %v157 = vld [vmem:[%s2 + $0x60] sm:$0xff]
    %v158 = vld [vmem:[%s2 + $0x68] sm:$0xff]
    %v159 = vld [vmem:[%s2 + $0x70] sm:$0xff]
    %v160 = vld [vmem:[%s2 + $0x78] sm:$0xff]
    %162 = vset.pattern.permute.xlu0 0
    %163 = vperm.xlu0 %162, %v145
    %v164 = vpop.permute.xlu0 %163
    %167 = vset.pattern.permute.xlu0 0
    %168 = vperm.xlu0 %167, %v146
    %v169 = vpop.permute.xlu0 %168
    %172 = vset.pattern.permute.xlu0 0
    %173 = vperm.xlu0 %172, %v147
    %v174 = vpop.permute.xlu0 %173
    %177 = vset.pattern.permute.xlu0 0
    %178 = vperm.xlu0 %177, %v148
    %v179 = vpop.permute.xlu0 %178
    %182 = vset.pattern.permute.xlu0 0
    %183 = vperm.xlu0 %182, %v149
    %v184 = vpop.permute.xlu0 %183
    %187 = vset.pattern.permute.xlu0 0
    %188 = vperm.xlu0 %187, %v150
    %v189 = vpop.permute.xlu0 %188
    %192 = vset.pattern.permute.xlu0 0
    %193 = vperm.xlu0 %192, %v151
    %v194 = vpop.permute.xlu0 %193
    %197 = vset.pattern.permute.xlu0 0
    %198 = vperm.xlu0 %197, %v152
    %v199 = vpop.permute.xlu0 %198
    %202 = vset.pattern.permute.xlu0 0
    %203 = vperm.xlu0 %202, %v153
    %v204 = vpop.permute.xlu0 %203
    %207 = vset.pattern.permute.xlu0 0
    %208 = vperm.xlu0 %207, %v154
    %v209 = vpop.permute.xlu0 %208
    %212 = vset.pattern.permute.xlu0 0
    %213 = vperm.xlu0 %212, %v155
    %v214 = vpop.permute.xlu0 %213
    %217 = vset.pattern.permute.xlu0 0
    %218 = vperm.xlu0 %217, %v156
    %v219 = vpop.permute.xlu0 %218
    %222 = vset.pattern.permute.xlu0 0
    %223 = vperm.xlu0 %222, %v157
    %v224 = vpop.permute.xlu0 %223
    %227 = vset.pattern.permute.xlu0 0
    %228 = vperm.xlu0 %227, %v158
    %v229 = vpop.permute.xlu0 %228
    %232 = vset.pattern.permute.xlu0 0
    %233 = vperm.xlu0 %232, %v159
    %v234 = vpop.permute.xlu0 %233
    %237 = vset.pattern.permute.xlu0 0
    %238 = vperm.xlu0 %237, %v160
    %v239 = vpop.permute.xlu0 %238
    %v241 = vadd.f32 %v129, %v164
    %v242 = vadd.f32 %v130, %v169
    %v243 = vadd.f32 %v131, %v174
    %v244 = vadd.f32 %v132, %v179
    %v245 = vadd.f32 %v133, %v184
    %v246 = vadd.f32 %v134, %v189
    %v247 = vadd.f32 %v135, %v194
    %v248 = vadd.f32 %v136, %v199
    %v249 = vadd.f32 %v137, %v204
    %v250 = vadd.f32 %v138, %v209
    %v251 = vadd.f32 %v139, %v214
    %v252 = vadd.f32 %v140, %v219
    %v253 = vadd.f32 %v141, %v224
    %v254 = vadd.f32 %v142, %v229
    %v255 = vadd.f32 %v143, %v234
    %v256 = vadd.f32 %v144, %v239
    %v257 = vtanh.pop %v241
    %v258 = vtanh.pop %v242
    %v259 = vtanh.pop %v243
    %v260 = vtanh.pop %v244
    %v261 = vtanh.pop %v245
    %v262 = vtanh.pop %v246
    %v263 = vtanh.pop %v247
    %v264 = vtanh.pop %v248
    %v265 = vtanh.pop %v249
    %v266 = vtanh.pop %v250
    %v267 = vtanh.pop %v251
    %v268 = vtanh.pop %v252
    %v269 = vtanh.pop %v253
    %v270 = vtanh.pop %v254
    %v271 = vtanh.pop %v255
    %v272 = vtanh.pop %v256
    %v273 = vpack.c.bf16 %v258, %v257
    %v274 = vpack.c.bf16 %v260, %v259
    %v275 = vpack.c.bf16 %v262, %v261
    %v276 = vpack.c.bf16 %v264, %v263
    %v277 = vpack.c.bf16 %v266, %v265
    %v278 = vpack.c.bf16 %v268, %v267
    %v279 = vpack.c.bf16 %v270, %v269
    %v280 = vpack.c.bf16 %v272, %v271
    %v281 = vld [vmem:[%s3] sm:$0xf]
    %v282 = vld [vmem:[%s3 + $0x4] sm:$0xf]
    %v283 = vld [vmem:[%s3 + $0x8] sm:$0xf]
    %v284 = vld [vmem:[%s3 + $0xc] sm:$0xf]
    %v285 = vld [vmem:[%s3 + $0x10] sm:$0xf]
    %v286 = vld [vmem:[%s3 + $0x14] sm:$0xf]
    %v287 = vld [vmem:[%s3 + $0x18] sm:$0xf]
    %v288 = vld [vmem:[%s3 + $0x1c] sm:$0xf]
    %v289 = vld [vmem:[%s3 + $0x20] sm:$0xf]
    %v290 = vld [vmem:[%s3 + $0x24] sm:$0xf]
    %v291 = vld [vmem:[%s3 + $0x28] sm:$0xf]
    %v292 = vld [vmem:[%s3 + $0x2c] sm:$0xf]
    %v293 = vld [vmem:[%s3 + $0x30] sm:$0xf]
    %v294 = vld [vmem:[%s3 + $0x34] sm:$0xf]
    %v295 = vld [vmem:[%s3 + $0x38] sm:$0xf]
    %v296 = vld [vmem:[%s3 + $0x3c] sm:$0xf]
    %v297 = vld [vmem:[%s4] sm:$0xff]
    %v298 = vld [vmem:[%s4 + $0x8] sm:$0xff]
    %v299 = vld [vmem:[%s4 + $0x10] sm:$0xff]
    %v300 = vld [vmem:[%s4 + $0x18] sm:$0xff]
    %v301 = vld [vmem:[%s4 + $0x20] sm:$0xff]
    %v302 = vld [vmem:[%s4 + $0x28] sm:$0xff]
    %v303 = vld [vmem:[%s4 + $0x30] sm:$0xff]
    %v304 = vld [vmem:[%s4 + $0x38] sm:$0xff]
    %v305 = vld [vmem:[%s4 + $0x40] sm:$0xff]
    %v306 = vld [vmem:[%s4 + $0x48] sm:$0xff]
    %v307 = vld [vmem:[%s4 + $0x50] sm:$0xff]
    %v308 = vld [vmem:[%s4 + $0x58] sm:$0xff]
    %v309 = vld [vmem:[%s4 + $0x60] sm:$0xff]
    %v310 = vld [vmem:[%s4 + $0x68] sm:$0xff]
    %v311 = vld [vmem:[%s4 + $0x70] sm:$0xff]
    %v312 = vld [vmem:[%s4 + $0x78] sm:$0xff]
    %314 = vset.pattern.permute.xlu0 0
    %315 = vperm.xlu0 %314, %v297
    %v316 = vpop.permute.xlu0 %315
    %319 = vset.pattern.permute.xlu0 0
    %320 = vperm.xlu0 %319, %v298
    %v321 = vpop.permute.xlu0 %320
    %324 = vset.pattern.permute.xlu0 0
    %325 = vperm.xlu0 %324, %v299
    %v326 = vpop.permute.xlu0 %325
    %329 = vset.pattern.permute.xlu0 0
    %330 = vperm.xlu0 %329, %v300
    %v331 = vpop.permute.xlu0 %330
    %334 = vset.pattern.permute.xlu0 0
    %335 = vperm.xlu0 %334, %v301
    %v336 = vpop.permute.xlu0 %335
    %339 = vset.pattern.permute.xlu0 0
    %340 = vperm.xlu0 %339, %v302
    %v341 = vpop.permute.xlu0 %340
    %344 = vset.pattern.permute.xlu0 0
    %345 = vperm.xlu0 %344, %v303
    %v346 = vpop.permute.xlu0 %345
    %349 = vset.pattern.permute.xlu0 0
    %350 = vperm.xlu0 %349, %v304
    %v351 = vpop.permute.xlu0 %350
    %354 = vset.pattern.permute.xlu0 0
    %355 = vperm.xlu0 %354, %v305
    %v356 = vpop.permute.xlu0 %355
    %359 = vset.pattern.permute.xlu0 0
    %360 = vperm.xlu0 %359, %v306
    %v361 = vpop.permute.xlu0 %360
    %364 = vset.pattern.permute.xlu0 0
    %365 = vperm.xlu0 %364, %v307
    %v366 = vpop.permute.xlu0 %365
    %369 = vset.pattern.permute.xlu0 0
    %370 = vperm.xlu0 %369, %v308
    %v371 = vpop.permute.xlu0 %370
    %374 = vset.pattern.permute.xlu0 0
    %375 = vperm.xlu0 %374, %v309
    %v376 = vpop.permute.xlu0 %375
    %379 = vset.pattern.permute.xlu0 0
    %380 = vperm.xlu0 %379, %v310
    %v381 = vpop.permute.xlu0 %380
    %384 = vset.pattern.permute.xlu0 0
    %385 = vperm.xlu0 %384, %v311
    %v386 = vpop.permute.xlu0 %385
    %389 = vset.pattern.permute.xlu0 0
    %390 = vperm.xlu0 %389, %v312
    %v391 = vpop.permute.xlu0 %390
    %v409 = vunpack.c.l.b16 %v281
    %v410 = vunpack.c.l.b16 %v282
    %v411 = vunpack.c.l.b16 %v283
    %v412 = vunpack.c.l.b16 %v284
    %v413 = vunpack.c.l.b16 %v285
    %v414 = vunpack.c.l.b16 %v286
    %v415 = vunpack.c.l.b16 %v287
    %v416 = vunpack.c.l.b16 %v288
    %v417 = vunpack.c.l.b16 %v289
    %v418 = vunpack.c.l.b16 %v290
    %v419 = vunpack.c.l.b16 %v291
    %v420 = vunpack.c.l.b16 %v292
    %v421 = vunpack.c.l.b16 %v293
    %v422 = vunpack.c.l.b16 %v294
    %v423 = vunpack.c.l.b16 %v295
    %v424 = vunpack.c.l.b16 %v296
    %v425 = vpack.c.b16 %v410, %v409
    %v426 = vpack.c.b16 %v412, %v411
    %v427 = vpack.c.b16 %v414, %v413
    %v428 = vpack.c.b16 %v416, %v415
    %v429 = vpack.c.b16 %v418, %v417
    %v430 = vpack.c.b16 %v420, %v419
    %v431 = vpack.c.b16 %v422, %v421
    %v432 = vpack.c.b16 %v424, %v423
    %441 = vmatpush.bf16.msra.mxu0 %v280
    %442 = vmatpush.bf16.msra.mxu0 %v279
    %443 = vmatpush.bf16.msra.mxu0 %v278
    %444 = vmatpush.bf16.msra.mxu0 %v277
    %445 = vmatpush.bf16.msra.mxu0 %v276
    %446 = vmatpush.bf16.msra.mxu0 %v275
    %447 = vmatpush.bf16.msra.mxu0 %v274
    %448 = vmatpush.bf16.msra.mxu0 %v273
    %449 = vmatmul.bf16.gmra.mxu0 %v425
    %v450 = vpop.f32.mrf.mxu0
    %v451 = vadd.f32 %v316, %v450
    %v452 = vpop.f32.mrf.mxu0
    %v453 = vadd.f32 %v321, %v452
    %454 = vmatmul.bf16.gmra.mxu0 %v426
    %v455 = vpop.f32.mrf.mxu0
    %v456 = vadd.f32 %v326, %v455
    %v457 = vpop.f32.mrf.mxu0
    %v458 = vadd.f32 %v331, %v457
    %459 = vmatmul.bf16.gmra.mxu0 %v427
    %v460 = vpop.f32.mrf.mxu0
    %v461 = vadd.f32 %v336, %v460
    %v462 = vpop.f32.mrf.mxu0
    %v463 = vadd.f32 %v341, %v462
    %464 = vmatmul.bf16.gmra.mxu0 %v428
    %v465 = vpop.f32.mrf.mxu0
    %v466 = vadd.f32 %v346, %v465
    %v467 = vpop.f32.mrf.mxu0
    %v468 = vadd.f32 %v351, %v467
    %469 = vmatmul.bf16.gmra.mxu0 %v429
    %v470 = vpop.f32.mrf.mxu0
    %v471 = vadd.f32 %v356, %v470
    %v472 = vpop.f32.mrf.mxu0
    %v473 = vadd.f32 %v361, %v472
    %474 = vmatmul.bf16.gmra.mxu0 %v430
    %v475 = vpop.f32.mrf.mxu0
    %v476 = vadd.f32 %v366, %v475
    %v477 = vpop.f32.mrf.mxu0
    %v478 = vadd.f32 %v371, %v477
    %479 = vmatmul.bf16.gmra.mxu0 %v431
    %v480 = vpop.f32.mrf.mxu0
    %v481 = vadd.f32 %v376, %v480
    %v482 = vpop.f32.mrf.mxu0
    %v483 = vadd.f32 %v381, %v482
    %484 = vmatmul.bf16.gmra.mxu0 %v432
    %v485 = vpop.f32.mrf.mxu0
    %v486 = vadd.f32 %v386, %v485
    %v487 = vpop.f32.mrf.mxu0
    %v488 = vadd.f32 %v391, %v487
    %489 = vdwg.mxu0
    %v490 = vtanh.pop %v451
    %v491 = vtanh.pop %v453
    %v492 = vtanh.pop %v456
    %v493 = vtanh.pop %v458
    %v494 = vtanh.pop %v461
    %v495 = vtanh.pop %v463
    %v496 = vtanh.pop %v466
    %v497 = vtanh.pop %v468
    %v498 = vtanh.pop %v471
    %v499 = vtanh.pop %v473
    %v500 = vtanh.pop %v476
    %v501 = vtanh.pop %v478
    %v502 = vtanh.pop %v481
    %v503 = vtanh.pop %v483
    %v504 = vtanh.pop %v486
    %v505 = vtanh.pop %v488
    %v506 = vld [vmem:[%s5] sm:$0xff]
    %v507 = vld [vmem:[%s5 + $0x8] sm:$0xff]
    %v508 = vld [vmem:[%s5 + $0x10] sm:$0xff]
    %v509 = vld [vmem:[%s5 + $0x18] sm:$0xff]
    %v510 = vld [vmem:[%s5 + $0x20] sm:$0xff]
    %v511 = vld [vmem:[%s5 + $0x28] sm:$0xff]
    %v512 = vld [vmem:[%s5 + $0x30] sm:$0xff]
    %v513 = vld [vmem:[%s5 + $0x38] sm:$0xff]
    %v514 = vld [vmem:[%s5 + $0x40] sm:$0xff]
    %v515 = vld [vmem:[%s5 + $0x48] sm:$0xff]
    %v516 = vld [vmem:[%s5 + $0x50] sm:$0xff]
    %v517 = vld [vmem:[%s5 + $0x58] sm:$0xff]
    %v518 = vld [vmem:[%s5 + $0x60] sm:$0xff]
    %v519 = vld [vmem:[%s5 + $0x68] sm:$0xff]
    %v520 = vld [vmem:[%s5 + $0x70] sm:$0xff]
    %v521 = vld [vmem:[%s5 + $0x78] sm:$0xff]
    %523 = vset.pattern.permute.xlu0 0
    %524 = vperm.xlu0 %523, %v506
    %v525 = vpop.permute.xlu0 %524
    %528 = vset.pattern.permute.xlu0 0
    %529 = vperm.xlu0 %528, %v507
    %v530 = vpop.permute.xlu0 %529
    %533 = vset.pattern.permute.xlu0 0
    %534 = vperm.xlu0 %533, %v508
    %v535 = vpop.permute.xlu0 %534
    %538 = vset.pattern.permute.xlu0 0
    %539 = vperm.xlu0 %538, %v509
    %v540 = vpop.permute.xlu0 %539
    %543 = vset.pattern.permute.xlu0 0
    %544 = vperm.xlu0 %543, %v510
    %v545 = vpop.permute.xlu0 %544
    %548 = vset.pattern.permute.xlu0 0
    %549 = vperm.xlu0 %548, %v511
    %v550 = vpop.permute.xlu0 %549
    %553 = vset.pattern.permute.xlu0 0
    %554 = vperm.xlu0 %553, %v512
    %v555 = vpop.permute.xlu0 %554
    %558 = vset.pattern.permute.xlu0 0
    %559 = vperm.xlu0 %558, %v513
    %v560 = vpop.permute.xlu0 %559
    %563 = vset.pattern.permute.xlu0 0
    %564 = vperm.xlu0 %563, %v514
    %v565 = vpop.permute.xlu0 %564
    %568 = vset.pattern.permute.xlu0 0
    %569 = vperm.xlu0 %568, %v515
    %v570 = vpop.permute.xlu0 %569
    %573 = vset.pattern.permute.xlu0 0
    %574 = vperm.xlu0 %573, %v516
    %v575 = vpop.permute.xlu0 %574
    %578 = vset.pattern.permute.xlu0 0
    %579 = vperm.xlu0 %578, %v517
    %v580 = vpop.permute.xlu0 %579
    %583 = vset.pattern.permute.xlu0 0
    %584 = vperm.xlu0 %583, %v518
    %v585 = vpop.permute.xlu0 %584
    %588 = vset.pattern.permute.xlu0 0
    %589 = vperm.xlu0 %588, %v519
    %v590 = vpop.permute.xlu0 %589
    %593 = vset.pattern.permute.xlu0 0
    %594 = vperm.xlu0 %593, %v520
    %v595 = vpop.permute.xlu0 %594
    %598 = vset.pattern.permute.xlu0 0
    %599 = vperm.xlu0 %598, %v521
    %v600 = vpop.permute.xlu0 %599
    %v602 = vmul.f32 %v525, %v490
    %v603 = vmul.f32 %v530, %v491
    %v604 = vmul.f32 %v535, %v492
    %v605 = vmul.f32 %v540, %v493
    %v606 = vmul.f32 %v545, %v494
    %v607 = vmul.f32 %v550, %v495
    %v608 = vmul.f32 %v555, %v496
    %v609 = vmul.f32 %v560, %v497
    %v610 = vmul.f32 %v565, %v498
    %v611 = vmul.f32 %v570, %v499
    %v612 = vmul.f32 %v575, %v500
    %v613 = vmul.f32 %v580, %v501
    %v614 = vmul.f32 %v585, %v502
    %v615 = vmul.f32 %v590, %v503
    %v616 = vmul.f32 %v595, %v504
    %v617 = vmul.f32 %v600, %v505
    %v618 = vadd.f32 %v602, %v603
    %v619 = vadd.f32 %v618, %v604
    %v620 = vadd.f32 %v619, %v605
    %v621 = vadd.f32 %v620, %v606
    %v622 = vadd.f32 %v621, %v607
    %v623 = vadd.f32 %v622, %v608
    %v624 = vadd.f32 %v623, %v609
    %v625 = vadd.f32 %v624, %v610
    %v626 = vadd.f32 %v625, %v611
    %v627 = vadd.f32 %v626, %v612
    %v628 = vadd.f32 %v627, %v613
    %v629 = vadd.f32 %v628, %v614
    %v630 = vadd.f32 %v629, %v615
    %v631 = vadd.f32 %v630, %v616
    %v632 = vadd.f32 %v631, %v617
    %v633 = vrot.slane %v632, 4
    %v634 = vadd.f32 %v632, %v633
    %v635 = vrot.slane %v634, 2
    %v636 = vadd.f32 %v634, %v635
    %v637 = vrot.slane %v636, 1
    %v638 = vadd.f32 %v636, %v637
    %v639 = vld [vmem:[#allocation2] sm:$0x1]
    %641 = vset.pattern.permute.xlu0 0
    %642 = vperm.xlu0 %641, %v639
    %v643 = vpop.permute.xlu0 %642
    %v645 = vperm.slane %v643, 0
    %v646 = vadd.f32 %v638, %v645
    %647 = vst [vmem:[#allocation3] sm:$0x1] %v646
    // Predicated region
    $region30: #{tpu_custom_call.1} parent=1 // pred_check
      _
    $region31: #{tpu_custom_call.1} parent=1 // pred_check_branch
      %649 = sbr.rel (0) target = $region33
    $region32: #{tpu_custom_call.1} parent=1 // pred_region
      %651 = vsyncadd [#allocation4], 0
      %s653 = sshll.u32 [#allocation3], 4
      %s654 = int_to_ptr.vmem [resolvable:$true] %s653
      %s655 = sshll.u32 %s7, 4
      %s656 = int_to_ptr.hbm [resolvable:$true] %s655
      %658 = dma.vmem_to_hbm [thread:$0]  %s654, 16, %s656, [#allocation4]
    $region33: #{tpu_custom_call.1} parent=1 // pred_fallthru
      _
    // Predicated region
    $region34: #{tpu_custom_call.1} parent=1 // pred_check
      _
    $region35: #{tpu_custom_call.1} parent=1 // pred_check_branch
      %660 = sbr.rel (0) target = $region37
    $region36: #{tpu_custom_call.1} parent=1 // pred_region
      %662 = dma.done [#allocation4], 16
    $region37: #{tpu_custom_call.1} parent=1 // pred_fallthru
      _
    %663 = vsyncpa [#allocation4], 1

</llo_original>
